<compile_context>
chip_gen: v7x
topology: tpu7x:2x2x1
jax: 0.10.0
libtpu: 0.0.40
codegen_flags: <defaults>
</compile_context>

<pallas_src>
import functools

import jax
import jax.numpy as jnp
from jax.experimental import pallas as pl
from jax.experimental.pallas import tpu as pltpu

HIDDEN = 40960  # fixed by the module definition


# ----------------------------------------------------------------------------
# Path 1: offline-folded params -> tiny matvec kernel
# ----------------------------------------------------------------------------
def fold_linear_params(w1, b1, w2, b2):
    """One-time algebraic fold (valid because there is no activation):
       fc2(fc1(x)) = x @ (W1 @ w2^T) + (b1 @ w2^T + b2).
       Fold done at HIGHEST precision (one-time cost, tightens numerics)."""
    w2_t = w2.reshape(-1, 1).astype(jnp.float32)                         # (H, 1)
    w_eff = jnp.dot(w1.astype(jnp.float32), w2_t,
                    precision=jax.lax.Precision.HIGHEST)                 # (K, 1)
    b_eff = (jnp.dot(b1.reshape(1, -1).astype(jnp.float32), w2_t,
                     precision=jax.lax.Precision.HIGHEST)
             + b2.reshape(1, 1).astype(jnp.float32))                     # (1, 1)
    return w_eff, b_eff


def folded_matvec_kernel(x_ref, w_ref, b_ref, o_ref):
    o_ref[...] = (
        jnp.dot(x_ref[...], w_ref[...], preferred_element_type=jnp.float32)
        + b_ref[...]
    ).astype(o_ref.dtype)


@jax.jit
def mlp_linear_folded(x, w_eff, b_eff):
    B = x.shape[0]
    xf = x.reshape(B, -1)  # torch: x.view(x.size(0), -1)
    vmem = pl.BlockSpec(memory_space=pltpu.MemorySpace.VMEM)
    return pl.pallas_call(
        folded_matvec_kernel,
        out_shape=jax.ShapeDtypeStruct((B, 1), x.dtype),
        in_specs=[vmem, vmem, vmem],
        out_specs=vmem,
    )(xf, w_eff, b_eff)


# ----------------------------------------------------------------------------
# Path 2: general fused streaming kernel (W1 not pre-foldable)
# ----------------------------------------------------------------------------
def fused_mlp_kernel(x_ref, w1_ref, w2_ref, o_ref, acc_ref):
    h_idx = pl.program_id(1)

    @pl.when(h_idx == 0)
    def _init():
        acc_ref[...] = jnp.zeros_like(acc_ref)

    # fc1 on this hidden tile (bias folded out): bf16 (B,K) @ bf16 (K,TH) -> f32 (B,TH)
    h = jnp.dot(x_ref[...], w1_ref[...], preferred_element_type=jnp.float32)
    # fc2 contribution of this tile on the MXU: contract (B,TH) with (1,TH)
    # over the lane axis -> (B,1).  w2 tile is f32 and lane-dense.
    acc_ref[...] += jax.lax.dot_general(
        h, w2_ref[...],
        dimension_numbers=(((1,), (1,)), ((), ())),
        preferred_element_type=jnp.float32,
    )

    @pl.when(h_idx == pl.num_programs(1) - 1)
    def _finalize():
        o_ref[...] = acc_ref[...].astype(o_ref.dtype)


def _tile_config():
    """Generation-aware hidden tile, VMEM budget, and TensorCore split."""
    vmem_phys = None
    try:
        vmem_phys = getattr(pltpu.get_tpu_info(), "vmem_capacity_bytes", None)
    except Exception as e:  # noqa: BLE001
        print(f"WARNING: get_tpu_info failed ({e!r}); using conservative v7x config")
    if vmem_phys is not None and vmem_phys >= (128 << 20):
        # v5e / v6e: 128 MiB physical VMEM, single TensorCore.
        # bf16 W1 slab = K*8192*2B = 16 MiB; 2 buffers = 32 MiB.
        return 8192, 80 << 20, 1
    # v7x (or unknown): 64 MiB physical VMEM, 2 TensorCores.
    # bf16 W1 slab = K*4096*2B = 8 MiB; 2 buffers = 16 MiB.
    return 4096, 48 << 20, 2


def prepare_fused_params(w1, b1, w2, b2, *, th):
    """One-time prep: contiguous bf16 per-tile W1 slabs, lane-dense f32 w2
    tiles, biases folded into a single scalar."""
    K, H = w1.shape
    assert H % th == 0
    nh = H // th
    # (nh, K, th): block h is w1[:, h*th:(h+1)*th], stored contiguously, bf16.
    w1_blk = jnp.transpose(w1.reshape(K, nh, th), (1, 0, 2)).astype(jnp.bfloat16)
    # (nh, 1, th): lane-dense w2 tiles, kept in f32 (only 160 KiB total).
    w2_blk = w2.reshape(1, nh, th).transpose(1, 0, 2).astype(jnp.float32)
    b_eff = (jnp.dot(b1.reshape(1, H).astype(jnp.float32),
                     w2.reshape(H, 1).astype(jnp.float32),
                     precision=jax.lax.Precision.HIGHEST)
             + b2.reshape(1, 1).astype(jnp.float32))
    return w1_blk, w2_blk, b_eff


@functools.partial(jax.jit, static_argnames=("th", "ncore", "vmem_limit_bytes"))
def mlp_linear_fused(x, w1_blk, w2_blk, b_eff, *, th, ncore, vmem_limit_bytes):
    B = x.shape[0]
    xf = x.reshape(B, -1).astype(jnp.bfloat16)   # tiny; MXU runs native bf16xbf16->f32
    K = xf.shape[1]
    nh = w1_blk.shape[0]
    H = nh * th
    assert nh % ncore == 0, "hidden tile count must divide across TensorCores"
    nh_per_core = nh // ncore

    cost = pl.CostEstimate(
        flops=2 * B * K * H + 2 * B * H,
        transcendentals=0,
        bytes_accessed=2 * K * H + 2 * B * K + 4 * H + 4 * ncore * B,
    )

    partials = pl.pallas_call(
        fused_mlp_kernel,
        out_shape=jax.ShapeDtypeStruct((ncore, B, 1), jnp.float32),
        grid_spec=pltpu.PrefetchScalarGridSpec(
            num_scalar_prefetch=0,
            grid=(ncore, nh_per_core),
            in_specs=[
                # x: small, resident across all grid steps
                pl.BlockSpec((B, K), lambda c, h: (0, 0)),
                # W1: one contiguous bf16 (K, th) slab per step, double-buffered
                pl.BlockSpec(
                    (None, K, th),
                    lambda c, h: (c * nh_per_core + h, 0, 0),
                    pipeline_mode=pl.Buffered(2),
                ),
                # w2: lane-dense (1, th) f32 tile per step
                pl.BlockSpec((None, 1, th), lambda c, h: (c * nh_per_core + h, 0, 0)),
            ],
            out_specs=pl.BlockSpec((None, B, 1), lambda c, h: (c, 0, 0)),
            scratch_shapes=[pltpu.VMEM((B, 1), jnp.float32)],
        ),
        compiler_params=pltpu.CompilerParams(
            dimension_semantics=("parallel", "arbitrary"),
            vmem_limit_bytes=vmem_limit_bytes,
        ),
        cost_estimate=cost,
    )(xf, w1_blk, w2_blk)

    # Combine per-TensorCore partials (trivial when ncore==1) and add the
    # folded bias (tiny epilogue).
    return (jnp.sum(partials, axis=0) + b_eff).astype(x.dtype)


# ----------------------------------------------------------------------------
# Param init matching torch.nn.Linear defaults (U(-1/sqrt(fan_in), 1/sqrt(fan_in)))
# ----------------------------------------------------------------------------
def init_params(key, input_size, hidden=HIDDEN, dtype=jnp.float32):
    k1, k2, k3, k4 = jax.random.split(key, 4)
    bound1 = 1.0 / (input_size ** 0.5)
    bound2 = 1.0 / (hidden ** 0.5)
    # stored as (K, H): transpose of torch's fc1.weight (H, K)
    w1 = jax.random.uniform(k1, (input_size, hidden), dtype, -bound1, bound1)
    b1 = jax.random.uniform(k2, (1, hidden), dtype, -bound1, bound1)
    # torch fc2.weight is (1, H); keep that layout
    w2 = jax.random.uniform(k3, (1, hidden), dtype, -bound2, bound2)
    b2 = jax.random.uniform(k4, (1, 1), dtype, -bound2, bound2)
    return w1, b1, w2, b2


if __name__ == "__main__":
    key = jax.random.PRNGKey(0)
    kx, kp = jax.random.split(key)

    # NCHW input (2, 4, 16, 16) -> input_size = 1024, consistent with the module.
    x = jax.random.normal(kx, (2, 4, 16, 16), jnp.float32)
    input_size = x.shape[1] * x.shape[2] * x.shape[3]
    w1, b1, w2, b2 = init_params(kp, input_size)

    # Pure-JAX f32 reference (unfused, same math as the torch module).
    xf = x.reshape(x.shape[0], -1)
    ref = (jnp.dot(jnp.dot(xf, w1, precision=jax.lax.Precision.HIGHEST) + b1,
                   w2.T, precision=jax.lax.Precision.HIGHEST) + b2)

    # Path 1: fold params once, run the tiny matvec kernel.
    w_eff, b_eff = fold_linear_params(w1, b1, w2, b2)
    out_folded = jax.block_until_ready(mlp_linear_folded(x, w_eff, b_eff))

    # Path 2: general streaming kernel with generation-aware tiling / core split.
    th, vmem_limit, ncore = _tile_config()
    w1_blk, w2_blk, b_fold = prepare_fused_params(w1, b1, w2, b2, th=th)
    out_fused = jax.block_until_ready(
        mlp_linear_fused(x, w1_blk, w2_blk, b_fold,
                         th=th, ncore=ncore, vmem_limit_bytes=vmem_limit)
    )

    assert out_folded.shape == (x.shape[0], 1)
    assert out_fused.shape == (x.shape[0], 1)
    # Tolerances account for bf16 W1/x storage in the streaming path and the
    # default MXU precision of the folded matvec vs. the f32 reference.
    assert jnp.allclose(out_folded, ref, rtol=2e-2, atol=1e-2), (out_folded, ref)
    assert jnp.allclose(out_fused, ref, rtol=3e-2, atol=1e-2), (out_fused, ref)

    print("KERNEL_OK")
</pallas_src>

<mosaic_0001>
module attributes {stable_mosaic.version = 11 : i64} {
  func.func @folded_matvec_kernel(%arg0: memref<2x1024xf32, #tpu.memory_space<vmem>>, %arg1: memref<1024x1xf32, #tpu.memory_space<vmem>>, %arg2: memref<1x1xf32, #tpu.memory_space<vmem>>, %arg3: memref<2x1xf32, #tpu.memory_space<vmem>>) attributes {dimension_semantics = [], scalar_prefetch = 0 : i64, scratch_operands = 0 : i64, tpu.core_type = #tpu.core_type<tc>} {
    %c0 = arith.constant 0 : index
    %c0_0 = arith.constant 0 : index
    %0 = vector.load %arg0[%c0, %c0_0] : memref<2x1024xf32, #tpu.memory_space<vmem>>, vector<2x1024xf32>
    %c0_1 = arith.constant 0 : index
    %c0_2 = arith.constant 0 : index
    %1 = vector.load %arg1[%c0_1, %c0_2] : memref<1024x1xf32, #tpu.memory_space<vmem>>, vector<1024x1xf32>
    %cst = arith.constant dense<0.000000e+00> : vector<2x1xf32>
    %2 = tpu.matmul %0, %1, %cst {dimension_numbers = #tpu.dot_dimension_numbers<[1], [0], [0], [1], [0, 0, 1, 1], [], []>} : vector<2x1024xf32>, vector<1024x1xf32>, vector<2x1xf32> -> vector<2x1xf32>
    %c0_3 = arith.constant 0 : index
    %c0_4 = arith.constant 0 : index
    %3 = vector.load %arg2[%c0_3, %c0_4] : memref<1x1xf32, #tpu.memory_space<vmem>>, vector<1x1xf32>
    %4 = vector.broadcast %3 : vector<1x1xf32> to vector<2x1xf32>
    %5 = arith.addf %2, %4 : vector<2x1xf32>
    %c0_5 = arith.constant 0 : index
    %c0_6 = arith.constant 0 : index
    %6 = vector.load %arg3[%c0_5, %c0_6] : memref<2x1xf32, #tpu.memory_space<vmem>>, vector<2x1xf32>
    tpu.vector_store %arg3[%c0_5, %c0_6], %5 {strides = array<i32>} : memref<2x1xf32, #tpu.memory_space<vmem>>, vector<2x1xf32>,
    return
  }
}

</mosaic_0001>

<llo_original>
// kernel: mlp_linear_folded.1
$region0: #{mlp_linear_folded.1}
  #allocation0 [shape = 'u32[]', space=smem, size = 0x4, offset = 0x4, fixed_abs, tag = 'smem constant byte address 0x4 - core index']
  #allocation1 [shape = 'u32[144,128]{1,0:T(1,128)}', space=vmem, size = 0x12000, scoped, tag = 'internal scratch']
  #allocation2 [shape = 'f32[1,1]{1,0:T(1,128)S(1)}', space=vmem, size = 0x200, scoped, tag = 'scoped memory for mlp_linear_folded.1']
  %s0 = inlined_call_operand.vmem [shape: f32[2,1024], index: 0, kind: input, shape index: {}]
  %s1 = inlined_call_operand.vmem [shape: f32[1024,1], index: 1, kind: input, shape index: {}]
  %s2 = inlined_call_operand.<no memory space> [shape: f32[1,1], index: 2, kind: input, shape index: {}]
  %s3 = inlined_call_operand.vmem [shape: f32[2,1], index: 3, kind: output, shape index: {}]
  %s4 = sld [smem:[#allocation0]]
  $region22: #{mlp_linear_folded.1} parent=0
    _
  %s6 = ssub.s32 1, %s4
  %s7 = scalar_select 0, %s6, %s4
  %v8 = vstv %s2
  %9 = vst [vmem:[#allocation2] sm:$0x1] %v8
  // Predicated region
  $region2: #{mlp_linear_folded.1} parent=0 // pred_check
    _
  $region3: #{mlp_linear_folded.1} parent=0 // pred_check_branch
    %11 = sbr.rel (0) target = $region5
  $region4: #{mlp_linear_folded.1} parent=0 // pred_region
    _
  $region5: #{mlp_linear_folded.1} parent=0 // pred_fallthru
    _
  // Predicated region
  $region6: #{mlp_linear_folded.1} parent=0 // pred_check
    _
  $region7: #{mlp_linear_folded.1} parent=0 // pred_check_branch
    %13 = sbr.rel (0) target = $region9
  $region8: #{mlp_linear_folded.1} parent=0 // pred_region
    _
  $region9: #{mlp_linear_folded.1} parent=0 // pred_fallthru
    _
  // Predicated region
  $region10: #{mlp_linear_folded.1} parent=0 // pred_check
    _
  $region11: #{mlp_linear_folded.1} parent=0 // pred_check_branch
    %15 = sbr.rel (0) target = $region13
  $region12: #{mlp_linear_folded.1} parent=0 // pred_region
    _
  $region13: #{mlp_linear_folded.1} parent=0 // pred_fallthru
    _
  %v16 = vld [vmem:[%s0] sm:$0xff]
  %v17 = vld [vmem:[%s0 + $0x8] sm:$0xff]
  %v18 = vld [vmem:[%s1] sm:$0xff]
  %v19 = vld [vmem:[%s1 + $0x8] sm:$0xff]
  %v20 = vld [vmem:[%s1 + $0x10] sm:$0xff]
  %v21 = vld [vmem:[%s1 + $0x18] sm:$0xff]
  %v22 = vld [vmem:[%s1 + $0x20] sm:$0xff]
  %v23 = vld [vmem:[%s1 + $0x28] sm:$0xff]
  %v24 = vld [vmem:[%s1 + $0x30] sm:$0xff]
  %v25 = vld [vmem:[%s1 + $0x38] sm:$0xff]
  %v26 = vld [vmem:[%s1 + $0x40] sm:$0xff]
  %v27 = vld [vmem:[%s1 + $0x48] sm:$0xff]
  %v28 = vld [vmem:[%s1 + $0x50] sm:$0xff]
  %v29 = vld [vmem:[%s1 + $0x58] sm:$0xff]
  %v30 = vld [vmem:[%s1 + $0x60] sm:$0xff]
  %v31 = vld [vmem:[%s1 + $0x68] sm:$0xff]
  %v32 = vld [vmem:[%s1 + $0x70] sm:$0xff]
  %v33 = vld [vmem:[%s1 + $0x78] sm:$0xff]
  %v34 = vld [vmem:[%s1 + $0x80] sm:$0xff]
  %v35 = vld [vmem:[%s1 + $0x88] sm:$0xff]
  %v36 = vld [vmem:[%s1 + $0x90] sm:$0xff]
  %v37 = vld [vmem:[%s1 + $0x98] sm:$0xff]
  %v38 = vld [vmem:[%s1 + $0xa0] sm:$0xff]
  %v39 = vld [vmem:[%s1 + $0xa8] sm:$0xff]
  %v40 = vld [vmem:[%s1 + $0xb0] sm:$0xff]
  %v41 = vld [vmem:[%s1 + $0xb8] sm:$0xff]
  %v42 = vld [vmem:[%s1 + $0xc0] sm:$0xff]
  %v43 = vld [vmem:[%s1 + $0xc8] sm:$0xff]
  %v44 = vld [vmem:[%s1 + $0xd0] sm:$0xff]
  %v45 = vld [vmem:[%s1 + $0xd8] sm:$0xff]
  %v46 = vld [vmem:[%s1 + $0xe0] sm:$0xff]
  %v47 = vld [vmem:[%s1 + $0xe8] sm:$0xff]
  %v48 = vld [vmem:[%s1 + $0xf0] sm:$0xff]
  %v49 = vld [vmem:[%s1 + $0xf8] sm:$0xff]
  %v50 = vld [vmem:[%s1 + $0x100] sm:$0xff]
  %v51 = vld [vmem:[%s1 + $0x108] sm:$0xff]
  %v52 = vld [vmem:[%s1 + $0x110] sm:$0xff]
  %v53 = vld [vmem:[%s1 + $0x118] sm:$0xff]
  %v54 = vld [vmem:[%s1 + $0x120] sm:$0xff]
  %v55 = vld [vmem:[%s1 + $0x128] sm:$0xff]
  %v56 = vld [vmem:[%s1 + $0x130] sm:$0xff]
  %v57 = vld [vmem:[%s1 + $0x138] sm:$0xff]
  %v58 = vld [vmem:[%s1 + $0x140] sm:$0xff]
  %v59 = vld [vmem:[%s1 + $0x148] sm:$0xff]
  %v60 = vld [vmem:[%s1 + $0x150] sm:$0xff]
  %v61 = vld [vmem:[%s1 + $0x158] sm:$0xff]
  %v62 = vld [vmem:[%s1 + $0x160] sm:$0xff]
  %v63 = vld [vmem:[%s1 + $0x168] sm:$0xff]
  %v64 = vld [vmem:[%s1 + $0x170] sm:$0xff]
  %v65 = vld [vmem:[%s1 + $0x178] sm:$0xff]
  %v66 = vld [vmem:[%s1 + $0x180] sm:$0xff]
  %v67 = vld [vmem:[%s1 + $0x188] sm:$0xff]
  %v68 = vld [vmem:[%s1 + $0x190] sm:$0xff]
  %v69 = vld [vmem:[%s1 + $0x198] sm:$0xff]
  %v70 = vld [vmem:[%s1 + $0x1a0] sm:$0xff]
  %v71 = vld [vmem:[%s1 + $0x1a8] sm:$0xff]
  %v72 = vld [vmem:[%s1 + $0x1b0] sm:$0xff]
  %v73 = vld [vmem:[%s1 + $0x1b8] sm:$0xff]
  %v74 = vld [vmem:[%s1 + $0x1c0] sm:$0xff]
  %v75 = vld [vmem:[%s1 + $0x1c8] sm:$0xff]
  %v76 = vld [vmem:[%s1 + $0x1d0] sm:$0xff]
  %v77 = vld [vmem:[%s1 + $0x1d8] sm:$0xff]
  %v78 = vld [vmem:[%s1 + $0x1e0] sm:$0xff]
  %v79 = vld [vmem:[%s1 + $0x1e8] sm:$0xff]
  %v80 = vld [vmem:[%s1 + $0x1f0] sm:$0xff]
  %v81 = vld [vmem:[%s1 + $0x1f8] sm:$0xff]
  %v82 = vld [vmem:[%s1 + $0x200] sm:$0xff]
  %v83 = vld [vmem:[%s1 + $0x208] sm:$0xff]
  %v84 = vld [vmem:[%s1 + $0x210] sm:$0xff]
  %v85 = vld [vmem:[%s1 + $0x218] sm:$0xff]
  %v86 = vld [vmem:[%s1 + $0x220] sm:$0xff]
  %v87 = vld [vmem:[%s1 + $0x228] sm:$0xff]
  %v88 = vld [vmem:[%s1 + $0x230] sm:$0xff]
  %v89 = vld [vmem:[%s1 + $0x238] sm:$0xff]
  %v90 = vld [vmem:[%s1 + $0x240] sm:$0xff]
  %v91 = vld [vmem:[%s1 + $0x248] sm:$0xff]
  %v92 = vld [vmem:[%s1 + $0x250] sm:$0xff]
  %v93 = vld [vmem:[%s1 + $0x258] sm:$0xff]
  %v94 = vld [vmem:[%s1 + $0x260] sm:$0xff]
  %v95 = vld [vmem:[%s1 + $0x268] sm:$0xff]
  %v96 = vld [vmem:[%s1 + $0x270] sm:$0xff]
  %v97 = vld [vmem:[%s1 + $0x278] sm:$0xff]
  %v98 = vld [vmem:[%s1 + $0x280] sm:$0xff]
  %v99 = vld [vmem:[%s1 + $0x288] sm:$0xff]
  %v100 = vld [vmem:[%s1 + $0x290] sm:$0xff]
  %v101 = vld [vmem:[%s1 + $0x298] sm:$0xff]
  %v102 = vld [vmem:[%s1 + $0x2a0] sm:$0xff]
  %v103 = vld [vmem:[%s1 + $0x2a8] sm:$0xff]
  %v104 = vld [vmem:[%s1 + $0x2b0] sm:$0xff]
  %v105 = vld [vmem:[%s1 + $0x2b8] sm:$0xff]
  %v106 = vld [vmem:[%s1 + $0x2c0] sm:$0xff]
  %v107 = vld [vmem:[%s1 + $0x2c8] sm:$0xff]
  %v108 = vld [vmem:[%s1 + $0x2d0] sm:$0xff]
  %v109 = vld [vmem:[%s1 + $0x2d8] sm:$0xff]
  %v110 = vld [vmem:[%s1 + $0x2e0] sm:$0xff]
  %v111 = vld [vmem:[%s1 + $0x2e8] sm:$0xff]
  %v112 = vld [vmem:[%s1 + $0x2f0] sm:$0xff]
  %v113 = vld [vmem:[%s1 + $0x2f8] sm:$0xff]
  %v114 = vld [vmem:[%s1 + $0x300] sm:$0xff]
  %v115 = vld [vmem:[%s1 + $0x308] sm:$0xff]
  %v116 = vld [vmem:[%s1 + $0x310] sm:$0xff]
  %v117 = vld [vmem:[%s1 + $0x318] sm:$0xff]
  %v118 = vld [vmem:[%s1 + $0x320] sm:$0xff]
  %v119 = vld [vmem:[%s1 + $0x328] sm:$0xff]
  %v120 = vld [vmem:[%s1 + $0x330] sm:$0xff]
  %v121 = vld [vmem:[%s1 + $0x338] sm:$0xff]
  %v122 = vld [vmem:[%s1 + $0x340] sm:$0xff]
  %v123 = vld [vmem:[%s1 + $0x348] sm:$0xff]
  %v124 = vld [vmem:[%s1 + $0x350] sm:$0xff]
  %v125 = vld [vmem:[%s1 + $0x358] sm:$0xff]
  %v126 = vld [vmem:[%s1 + $0x360] sm:$0xff]
  %v127 = vld [vmem:[%s1 + $0x368] sm:$0xff]
  %v128 = vld [vmem:[%s1 + $0x370] sm:$0xff]
  %v129 = vld [vmem:[%s1 + $0x378] sm:$0xff]
  %v130 = vld [vmem:[%s1 + $0x380] sm:$0xff]
  %v131 = vld [vmem:[%s1 + $0x388] sm:$0xff]
  %v132 = vld [vmem:[%s1 + $0x390] sm:$0xff]
  %v133 = vld [vmem:[%s1 + $0x398] sm:$0xff]
  %v134 = vld [vmem:[%s1 + $0x3a0] sm:$0xff]
  %v135 = vld [vmem:[%s1 + $0x3a8] sm:$0xff]
  %v136 = vld [vmem:[%s1 + $0x3b0] sm:$0xff]
  %v137 = vld [vmem:[%s1 + $0x3b8] sm:$0xff]
  %v138 = vld [vmem:[%s1 + $0x3c0] sm:$0xff]
  %v139 = vld [vmem:[%s1 + $0x3c8] sm:$0xff]
  %v140 = vld [vmem:[%s1 + $0x3d0] sm:$0xff]
  %v141 = vld [vmem:[%s1 + $0x3d8] sm:$0xff]
  %v142 = vld [vmem:[%s1 + $0x3e0] sm:$0xff]
  %v143 = vld [vmem:[%s1 + $0x3e8] sm:$0xff]
  %v144 = vld [vmem:[%s1 + $0x3f0] sm:$0xff]
  %v145 = vld [vmem:[%s1 + $0x3f8] sm:$0xff]
  %v146 = vld [vmem:[#allocation2] sm:$0x1]
  %v148 = vlaneseq
  %v149 = vshrl.u32 %v148, 7
  %v150 = vsub.s32 0, %v149
  %v151 = vrot.slane %v146, %v150
  %v155 = vcombine.high %v16, %v16
  %v157 = vunpack.c.l.s4 1983009808
  %v158 = vunpack.c.0.s8 %v157
  %v159 = vlaneseq
  %v160 = vshrl.u32 %v159, 7
  %v161 = vsub.s32 %v158, %v160
  %v162 = vrot.slane %v16, %v161
  %v164 = vunpack.c.l.s4 1983009808
  %v165 = vunpack.c.0.s8 %v164
  %v166 = vlaneseq
  %v167 = vshrl.u32 %v166, 7
  %v168 = vsub.s32 %v165, %v167
  %v169 = vrot.slane %v155, %v168
  %v170 = vcombine.high %v162, %v162
  %v171 = vcombine.high %v169, %v169
  %v172 = vcombine.high %v17, %v17
  %v174 = vunpack.c.l.s4 1983009808
  %v175 = vunpack.c.0.s8 %v174
  %v176 = vlaneseq
  %v177 = vshrl.u32 %v176, 7
  %v178 = vsub.s32 %v175, %v177
  %v179 = vrot.slane %v17, %v178
  %v181 = vunpack.c.l.s4 1983009808
  %v182 = vunpack.c.0.s8 %v181
  %v183 = vlaneseq
  %v184 = vshrl.u32 %v183, 7
  %v185 = vsub.s32 %v182, %v184
  %v186 = vrot.slane %v172, %v185
  %v187 = vcombine.high %v179, %v179
  %v188 = vcombine.high %v186, %v186
  %197 = vmatprep.subr.mxu0 0.0
  %198 = vmatpush1.msra.mxu0 %v18
  %199 = vmatprep.subr.mxu0 0.0
  %200 = vmatpush1.msra.mxu0 %v19
  %201 = vmatprep.subr.mxu0 0.0
  %202 = vmatpush1.msra.mxu0 %v20
  %203 = vmatprep.subr.mxu0 0.0
  %204 = vmatpush1.msra.mxu0 %v21
  %205 = vmatprep.subr.mxu0 0.0
  %206 = vmatpush1.msra.mxu0 %v22
  %207 = vmatprep.subr.mxu0 0.0
  %208 = vmatpush1.msra.mxu0 %v23
  %209 = vmatprep.subr.mxu0 0.0
  %210 = vmatpush1.msra.mxu0 %v24
  %211 = vmatprep.subr.mxu0 0.0
  %212 = vmatpush1.msra.mxu0 %v25
  %213 = vmatprep.subr.mxu0 0.0
  %214 = vmatpush1.msra.mxu0 %v26
  %215 = vmatprep.subr.mxu0 0.0
  %216 = vmatpush1.msra.mxu0 %v27
  %217 = vmatprep.subr.mxu0 0.0
  %218 = vmatpush1.msra.mxu0 %v28
  %219 = vmatprep.subr.mxu0 0.0
  %220 = vmatpush1.msra.mxu0 %v29
  %221 = vmatprep.subr.mxu0 0.0
  %222 = vmatpush1.msra.mxu0 %v30
  %223 = vmatprep.subr.mxu0 0.0
  %224 = vmatpush1.msra.mxu0 %v31
  %225 = vmatprep.subr.mxu0 0.0
  %226 = vmatpush1.msra.mxu0 %v32
  %227 = vmatprep.subr.mxu0 0.0
  %228 = vmatpush1.msra.mxu0 %v33
  %229 = vmatprep.subr.mxu0 0.0
  %230 = vmatpush1.msra.mxu0 %v34
  %231 = vmatprep.subr.mxu0 0.0
  %232 = vmatpush1.msra.mxu0 %v35
  %233 = vmatprep.subr.mxu0 0.0
  %234 = vmatpush1.msra.mxu0 %v36
  %235 = vmatprep.subr.mxu0 0.0
  %236 = vmatpush1.msra.mxu0 %v37
  %237 = vmatprep.subr.mxu0 0.0
  %238 = vmatpush1.msra.mxu0 %v38
  %239 = vmatprep.subr.mxu0 0.0
  %240 = vmatpush1.msra.mxu0 %v39
  %241 = vmatprep.subr.mxu0 0.0
  %242 = vmatpush1.msra.mxu0 %v40
  %243 = vmatprep.subr.mxu0 0.0
  %244 = vmatpush1.msra.mxu0 %v41
  %245 = vmatprep.subr.mxu0 0.0
  %246 = vmatpush1.msra.mxu0 %v42
  %247 = vmatprep.subr.mxu0 0.0
  %248 = vmatpush1.msra.mxu0 %v43
  %249 = vmatprep.subr.mxu0 0.0
  %250 = vmatpush1.msra.mxu0 %v44
  %251 = vmatprep.subr.mxu0 0.0
  %252 = vmatpush1.msra.mxu0 %v45
  %253 = vmatprep.subr.mxu0 0.0
  %254 = vmatpush1.msra.mxu0 %v46
  %255 = vmatprep.subr.mxu0 0.0
  %256 = vmatpush1.msra.mxu0 %v47
  %257 = vmatprep.subr.mxu0 0.0
  %258 = vmatpush1.msra.mxu0 %v48
  %259 = vmatprep.subr.mxu0 0.0
  %260 = vmatpush1.msra.mxu0 %v49
  %261 = vmatprep.mubr.f32.mxu0 %v170
  %262 = vmatmul.mubr.f32.gmra.mrb[0].mxu0 %v162
  %v263 = vpop.f32.mrb[0].mxu0
  %v264 = vadd.f32 %v151, %v263
  %v265 = vpop.f32.mrb[0].mxu0
  %266 = vdwg.mxu0
  %267 = vmatprep.subr.mxu0 0.0
  %268 = vmatpush1.msra.mxu0 %v50
  %269 = vmatprep.subr.mxu0 0.0
  %270 = vmatpush1.msra.mxu0 %v51
  %271 = vmatprep.subr.mxu0 0.0
  %272 = vmatpush1.msra.mxu0 %v52
  %273 = vmatprep.subr.mxu0 0.0
  %274 = vmatpush1.msra.mxu0 %v53
  %275 = vmatprep.subr.mxu0 0.0
  %276 = vmatpush1.msra.mxu0 %v54
  %277 = vmatprep.subr.mxu0 0.0
  %278 = vmatpush1.msra.mxu0 %v55
  %279 = vmatprep.subr.mxu0 0.0
  %280 = vmatpush1.msra.mxu0 %v56
  %281 = vmatprep.subr.mxu0 0.0
  %282 = vmatpush1.msra.mxu0 %v57
  %283 = vmatprep.subr.mxu0 0.0
  %284 = vmatpush1.msra.mxu0 %v58
  %285 = vmatprep.subr.mxu0 0.0
  %286 = vmatpush1.msra.mxu0 %v59
  %287 = vmatprep.subr.mxu0 0.0
  %288 = vmatpush1.msra.mxu0 %v60
  %289 = vmatprep.subr.mxu0 0.0
  %290 = vmatpush1.msra.mxu0 %v61
  %291 = vmatprep.subr.mxu0 0.0
  %292 = vmatpush1.msra.mxu0 %v62
  %293 = vmatprep.subr.mxu0 0.0
  %294 = vmatpush1.msra.mxu0 %v63
  %295 = vmatprep.subr.mxu0 0.0
  %296 = vmatpush1.msra.mxu0 %v64
  %297 = vmatprep.subr.mxu0 0.0
  %298 = vmatpush1.msra.mxu0 %v65
  %299 = vmatprep.subr.mxu0 0.0
  %300 = vmatpush1.msra.mxu0 %v66
  %301 = vmatprep.subr.mxu0 0.0
  %302 = vmatpush1.msra.mxu0 %v67
  %303 = vmatprep.subr.mxu0 0.0
  %304 = vmatpush1.msra.mxu0 %v68
  %305 = vmatprep.subr.mxu0 0.0
  %306 = vmatpush1.msra.mxu0 %v69
  %307 = vmatprep.subr.mxu0 0.0
  %308 = vmatpush1.msra.mxu0 %v70
  %309 = vmatprep.subr.mxu0 0.0
  %310 = vmatpush1.msra.mxu0 %v71
  %311 = vmatprep.subr.mxu0 0.0
  %312 = vmatpush1.msra.mxu0 %v72
  %313 = vmatprep.subr.mxu0 0.0
  %314 = vmatpush1.msra.mxu0 %v73
  %315 = vmatprep.subr.mxu0 0.0
  %316 = vmatpush1.msra.mxu0 %v74
  %317 = vmatprep.subr.mxu0 0.0
  %318 = vmatpush1.msra.mxu0 %v75
  %319 = vmatprep.subr.mxu0 0.0
  %320 = vmatpush1.msra.mxu0 %v76
  %321 = vmatprep.subr.mxu0 0.0
  %322 = vmatpush1.msra.mxu0 %v77
  %323 = vmatprep.subr.mxu0 0.0
  %324 = vmatpush1.msra.mxu0 %v78
  %325 = vmatprep.subr.mxu0 0.0
  %326 = vmatpush1.msra.mxu0 %v79
  %327 = vmatprep.subr.mxu0 0.0
  %328 = vmatpush1.msra.mxu0 %v80
  %329 = vmatprep.subr.mxu0 0.0
  %330 = vmatpush1.msra.mxu0 %v81
  %331 = vmatprep.mubr.f32.mxu0 %v171
  %332 = vmatmul.mubr.f32.gmra.mrb[0].mxu0 %v169
  %v333 = vpop.f32.mrb[0].mxu0
  %v334 = vadd.f32 %v264, %v333
  %v335 = vpop.f32.mrb[0].mxu0
  %336 = vdwg.mxu0
  %337 = vmatprep.subr.mxu0 0.0
  %338 = vmatpush1.msra.mxu0 %v82
  %339 = vmatprep.subr.mxu0 0.0
  %340 = vmatpush1.msra.mxu0 %v83
  %341 = vmatprep.subr.mxu0 0.0
  %342 = vmatpush1.msra.mxu0 %v84
  %343 = vmatprep.subr.mxu0 0.0
  %344 = vmatpush1.msra.mxu0 %v85
  %345 = vmatprep.subr.mxu0 0.0
  %346 = vmatpush1.msra.mxu0 %v86
  %347 = vmatprep.subr.mxu0 0.0
  %348 = vmatpush1.msra.mxu0 %v87
  %349 = vmatprep.subr.mxu0 0.0
  %350 = vmatpush1.msra.mxu0 %v88
  %351 = vmatprep.subr.mxu0 0.0
  %352 = vmatpush1.msra.mxu0 %v89
  %353 = vmatprep.subr.mxu0 0.0
  %354 = vmatpush1.msra.mxu0 %v90
  %355 = vmatprep.subr.mxu0 0.0
  %356 = vmatpush1.msra.mxu0 %v91
  %357 = vmatprep.subr.mxu0 0.0
  %358 = vmatpush1.msra.mxu0 %v92
  %359 = vmatprep.subr.mxu0 0.0
  %360 = vmatpush1.msra.mxu0 %v93
  %361 = vmatprep.subr.mxu0 0.0
  %362 = vmatpush1.msra.mxu0 %v94
  %363 = vmatprep.subr.mxu0 0.0
  %364 = vmatpush1.msra.mxu0 %v95
  %365 = vmatprep.subr.mxu0 0.0
  %366 = vmatpush1.msra.mxu0 %v96
  %367 = vmatprep.subr.mxu0 0.0
  %368 = vmatpush1.msra.mxu0 %v97
  %369 = vmatprep.subr.mxu0 0.0
  %370 = vmatpush1.msra.mxu0 %v98
  %371 = vmatprep.subr.mxu0 0.0
  %372 = vmatpush1.msra.mxu0 %v99
  %373 = vmatprep.subr.mxu0 0.0
  %374 = vmatpush1.msra.mxu0 %v100
  %375 = vmatprep.subr.mxu0 0.0
  %376 = vmatpush1.msra.mxu0 %v101
  %377 = vmatprep.subr.mxu0 0.0
  %378 = vmatpush1.msra.mxu0 %v102
  %379 = vmatprep.subr.mxu0 0.0
  %380 = vmatpush1.msra.mxu0 %v103
  %381 = vmatprep.subr.mxu0 0.0
  %382 = vmatpush1.msra.mxu0 %v104
  %383 = vmatprep.subr.mxu0 0.0
  %384 = vmatpush1.msra.mxu0 %v105
  %385 = vmatprep.subr.mxu0 0.0
  %386 = vmatpush1.msra.mxu0 %v106
  %387 = vmatprep.subr.mxu0 0.0
  %388 = vmatpush1.msra.mxu0 %v107
  %389 = vmatprep.subr.mxu0 0.0
  %390 = vmatpush1.msra.mxu0 %v108
  %391 = vmatprep.subr.mxu0 0.0
  %392 = vmatpush1.msra.mxu0 %v109
  %393 = vmatprep.subr.mxu0 0.0
  %394 = vmatpush1.msra.mxu0 %v110
  %395 = vmatprep.subr.mxu0 0.0
  %396 = vmatpush1.msra.mxu0 %v111
  %397 = vmatprep.subr.mxu0 0.0
  %398 = vmatpush1.msra.mxu0 %v112
  %399 = vmatprep.subr.mxu0 0.0
  %400 = vmatpush1.msra.mxu0 %v113
  %401 = vmatprep.mubr.f32.mxu0 %v187
  %402 = vmatmul.mubr.f32.gmra.mrb[0].mxu0 %v179
  %v403 = vpop.f32.mrb[0].mxu0
  %v404 = vadd.f32 %v334, %v403
  %v405 = vpop.f32.mrb[0].mxu0
  %406 = vdwg.mxu0
  %407 = vmatprep.subr.mxu0 0.0
  %408 = vmatpush1.msra.mxu0 %v114
  %409 = vmatprep.subr.mxu0 0.0
  %410 = vmatpush1.msra.mxu0 %v115
  %411 = vmatprep.subr.mxu0 0.0
  %412 = vmatpush1.msra.mxu0 %v116
  %413 = vmatprep.subr.mxu0 0.0
  %414 = vmatpush1.msra.mxu0 %v117
  %415 = vmatprep.subr.mxu0 0.0
  %416 = vmatpush1.msra.mxu0 %v118
  %417 = vmatprep.subr.mxu0 0.0
  %418 = vmatpush1.msra.mxu0 %v119
  %419 = vmatprep.subr.mxu0 0.0
  %420 = vmatpush1.msra.mxu0 %v120
  %421 = vmatprep.subr.mxu0 0.0
  %422 = vmatpush1.msra.mxu0 %v121
  %423 = vmatprep.subr.mxu0 0.0
  %424 = vmatpush1.msra.mxu0 %v122
  %425 = vmatprep.subr.mxu0 0.0
  %426 = vmatpush1.msra.mxu0 %v123
  %427 = vmatprep.subr.mxu0 0.0
  %428 = vmatpush1.msra.mxu0 %v124
  %429 = vmatprep.subr.mxu0 0.0
  %430 = vmatpush1.msra.mxu0 %v125
  %431 = vmatprep.subr.mxu0 0.0
  %432 = vmatpush1.msra.mxu0 %v126
  %433 = vmatprep.subr.mxu0 0.0
  %434 = vmatpush1.msra.mxu0 %v127
  %435 = vmatprep.subr.mxu0 0.0
  %436 = vmatpush1.msra.mxu0 %v128
  %437 = vmatprep.subr.mxu0 0.0
  %438 = vmatpush1.msra.mxu0 %v129
  %439 = vmatprep.subr.mxu0 0.0
  %440 = vmatpush1.msra.mxu0 %v130
  %441 = vmatprep.subr.mxu0 0.0
  %442 = vmatpush1.msra.mxu0 %v131
  %443 = vmatprep.subr.mxu0 0.0
  %444 = vmatpush1.msra.mxu0 %v132
  %445 = vmatprep.subr.mxu0 0.0
  %446 = vmatpush1.msra.mxu0 %v133
  %447 = vmatprep.subr.mxu0 0.0
  %448 = vmatpush1.msra.mxu0 %v134
  %449 = vmatprep.subr.mxu0 0.0
  %450 = vmatpush1.msra.mxu0 %v135
  %451 = vmatprep.subr.mxu0 0.0
  %452 = vmatpush1.msra.mxu0 %v136
  %453 = vmatprep.subr.mxu0 0.0
  %454 = vmatpush1.msra.mxu0 %v137
  %455 = vmatprep.subr.mxu0 0.0
  %456 = vmatpush1.msra.mxu0 %v138
  %457 = vmatprep.subr.mxu0 0.0
  %458 = vmatpush1.msra.mxu0 %v139
  %459 = vmatprep.subr.mxu0 0.0
  %460 = vmatpush1.msra.mxu0 %v140
  %461 = vmatprep.subr.mxu0 0.0
  %462 = vmatpush1.msra.mxu0 %v141
  %463 = vmatprep.subr.mxu0 0.0
  %464 = vmatpush1.msra.mxu0 %v142
  %465 = vmatprep.subr.mxu0 0.0
  %466 = vmatpush1.msra.mxu0 %v143
  %467 = vmatprep.subr.mxu0 0.0
  %468 = vmatpush1.msra.mxu0 %v144
  %469 = vmatprep.subr.mxu0 0.0
  %470 = vmatpush1.msra.mxu0 %v145
  %471 = vmatprep.mubr.f32.mxu0 %v188
  %472 = vmatmul.mubr.f32.gmra.mrb[0].mxu0 %v186
  %v473 = vpop.f32.mrb[0].mxu0
  %v474 = vadd.f32 %v404, %v473
  %v475 = vpop.f32.mrb[0].mxu0
  %476 = vdwg.mxu0
  %vm477 = vcmask 1024
  %478 = vst.msk [vmem:[%s3] sm:$0x3] %vm477, %v474
  // Predicated region
  $region14: #{mlp_linear_folded.1} parent=0 // pred_check
    _
  $region15: #{mlp_linear_folded.1} parent=0 // pred_check_branch
    %480 = sbr.rel (0) target = $region17
  $region16: #{mlp_linear_folded.1} parent=0 // pred_region
    _
  $region17: #{mlp_linear_folded.1} parent=0 // pred_fallthru
    _
  // Predicated region
  $region18: #{mlp_linear_folded.1} parent=0 // pred_check
    _
  $region19: #{mlp_linear_folded.1} parent=0 // pred_check_branch
    %482 = sbr.rel (0) target = $region21
  $region20: #{mlp_linear_folded.1} parent=0 // pred_region
    _
  $region21: #{mlp_linear_folded.1} parent=0 // pred_fallthru
    _

</llo_original>
